<compile_context>
chip_gen: v6e
topology: v6e:2x2x1
jax: 0.10.0
libtpu: 0.0.40
codegen_flags: <defaults>
</compile_context>

<pallas_src>
import math
import numpy as np
import jax
import jax.numpy as jnp
from jax.experimental import pallas as pl
from jax.experimental.pallas import tpu as pltpu

LMAX = 8
NUM_VECTORS = 64
N_COEFF = sum(2 * l + 1 for l in range(0, LMAX + 1, 2))  # 45 for lmax=8


# ----------------------------------------------------------------------------
# Deterministic PSF vectors (stand-in for dipy HemiSphere + disperse_charges).
# ----------------------------------------------------------------------------
def fibonacci_hemisphere(n):
    i = np.arange(n, dtype=np.float64) + 0.5
    golden = math.pi * (3.0 - math.sqrt(5.0))
    z = i / n                                   # (0, 1] -> upper hemisphere
    r = np.sqrt(np.clip(1.0 - z * z, 0.0, 1.0))
    phi = golden * i
    pts = np.stack([r * np.cos(phi), r * np.sin(phi), z], axis=-1)
    pts /= np.linalg.norm(pts, axis=-1, keepdims=True)
    return pts.astype(np.float32)


# ----------------------------------------------------------------------------
# Real (even-order) spherical-harmonic basis, evaluated in plain JAX.
# TODO(synk): e3nn's spherical_harmonics + Tournier sign-flip convention cannot
#             be imported here; this uses the standard orthonormal real SH
#             basis instead (consistent between M_p and M_prime, so the
#             reorientation semantics pinv(M) -> re-project are preserved).
# ----------------------------------------------------------------------------
def real_sh_basis(xyz, lmax=LMAX):
    """xyz: (..., 3) -> (..., N_COEFF); directions are normalized internally."""
    x, y, z = xyz[..., 0], xyz[..., 1], xyz[..., 2]
    r = jnp.sqrt(x * x + y * y + z * z) + 1e-12
    x, y, z = x / r, y / r, z / r
    ct = z
    st = jnp.sqrt(jnp.clip(1.0 - ct * ct, 0.0, 1.0))
    phi = jnp.arctan2(y, x)

    # associated Legendre P_l^m(ct), 0 <= m <= l <= lmax (Condon-Shortley)
    P = {(0, 0): jnp.ones_like(ct)}
    for m in range(1, lmax + 1):
        P[(m, m)] = -(2 * m - 1) * st * P[(m - 1, m - 1)]
    for m in range(0, lmax):
        P[(m + 1, m)] = (2 * m + 1) * ct * P[(m, m)]
    for m in range(0, lmax + 1):
        for l in range(m + 2, lmax + 1):
            P[(l, m)] = ((2 * l - 1) * ct * P[(l - 1, m)]
                         - (l + m - 1) * P[(l - 2, m)]) / (l - m)

    cols = []
    for l in range(0, lmax + 1, 2):
        for m in range(-l, l + 1):
            am = abs(m)
            norm = math.sqrt((2 * l + 1) / (4.0 * math.pi)
                             * math.factorial(l - am) / math.factorial(l + am))
            if m == 0:
                col = norm * P[(l, 0)]
            elif m > 0:
                col = math.sqrt(2.0) * norm * P[(l, am)] * jnp.cos(am * phi)
            else:
                col = math.sqrt(2.0) * norm * P[(l, am)] * jnp.sin(am * phi)
            cols.append(col)
    return jnp.stack(cols, axis=-1).astype(jnp.float32)


# ----------------------------------------------------------------------------
# Pallas kernel: per voxel tile, out = img @ K_b   (single fused matmul)
# ----------------------------------------------------------------------------
def _reorient_kernel(img_ref, k_ref, out_ref):
    # img_ref: (tv, C), k_ref: (C, C), out_ref: (tv, C)  (batch dim squeezed).
    # bf16 operands: avoids the ~3x f32 MXU-emulation passes; the cast is free
    # (hidden under the MXU slot) and accumulation stays in f32.
    img = img_ref[...].astype(jnp.bfloat16)
    k = k_ref[...].astype(jnp.bfloat16)
    out_ref[...] = jnp.dot(
        img, k, preferred_element_type=jnp.float32).astype(out_ref.dtype)


def reorient_pallas(img, K, tv=4096):
    """img: (B, V, C), K: (B, C, C) -> out: (B, V, C) with out[b] = img[b] @ K[b]."""
    B, V, C = img.shape

    # --- tile sizing -------------------------------------------------------
    tv = min(tv, V)
    if B == 1 and V >= 16:
        # Ensure >= 2 V-tiles so v7x's two TensorCores both get work when the
        # V axis is the only parallel grid dimension.
        half = ((pl.cdiv(V, 2) + 7) // 8) * 8
        tv = min(tv, half)
    if tv != V and tv % 8 != 0:
        tv = max(8, (tv // 8) * 8)   # (8, 128) sublane constraint on block dims
    n_vt = pl.cdiv(V, tv)            # ragged tail handled by Pallas boundary masking

    # --- VMEM budget (real, lane-padded footprint: C=45 pads to 128 lanes) --
    lane_pad = ((C + 127) // 128) * 128
    tile_bytes = tv * lane_pad * 4                       # one (tv, C) f32 buffer
    k_bytes = (((C + 7) // 8) * 8) * lane_pad * 4        # one (C, C) f32 buffer
    vmem_need = 2 * (2 * tile_bytes) + 2 * k_bytes       # in+out double-buffered + K
    # At tv=4096 this is ~8 MiB (fits v5e's 16 MiB default scoped VMEM); the
    # explicit limit keeps larger tv values compiling, capped safely below
    # v7x's 64 MiB physical VMEM.
    vmem_limit = int(min(max(2 * vmem_need, 32 * 1024 * 1024), 48 * 1024 * 1024))

    flops = 2 * B * V * C * C
    bytes_accessed = 2 * B * V * C * img.dtype.itemsize + B * C * C * K.dtype.itemsize

    # --- grid ordering -----------------------------------------------------
    # B >= 2: B outer so K's block index is constant across the inner V axis
    #         (its DMA is skipped on revisits); megacore shards on B.
    # B == 1: V leads (>= 2 tiles ensured above) so megacore shards on V;
    #         K's index is constant anyway since there is only one batch.
    if B == 1:
        grid = (n_vt, B)
        img_spec = pl.BlockSpec((None, tv, C), lambda v, b: (b, v, 0))
        k_spec = pl.BlockSpec((None, C, C), lambda v, b: (b, 0, 0))
        out_spec = pl.BlockSpec((None, tv, C), lambda v, b: (b, v, 0))
    else:
        grid = (B, n_vt)
        img_spec = pl.BlockSpec((None, tv, C), lambda b, v: (b, v, 0))
        k_spec = pl.BlockSpec((None, C, C), lambda b, v: (b, 0, 0))
        out_spec = pl.BlockSpec((None, tv, C), lambda b, v: (b, v, 0))

    return pl.pallas_call(
        _reorient_kernel,
        out_shape=jax.ShapeDtypeStruct((B, V, C), img.dtype),
        grid=grid,
        in_specs=[img_spec, k_spec],
        out_specs=out_spec,
        compiler_params=pltpu.CompilerParams(
            dimension_semantics=("parallel", "parallel"),
            vmem_limit_bytes=vmem_limit),
        cost_estimate=pl.CostEstimate(
            flops=flops, transcendentals=0, bytes_accessed=bytes_accessed),
    )(img, K)


# ----------------------------------------------------------------------------
# Module equivalent
# ----------------------------------------------------------------------------
class FODFReorientation:
    def __init__(self, num_vectors=NUM_VECTORS, lmax=LMAX):
        self.lmax = lmax
        self.psf_vectors = jnp.asarray(fibonacci_hemisphere(num_vectors))     # (N, 3)
        M = real_sh_basis(self.psf_vectors, lmax).T                            # (C, N)
        self.M_p = jnp.linalg.pinv(M).astype(jnp.float32)                      # (N, C)

    def __call__(self, image, affine, modulate=True):
        # image: (B, X, Y, Z, C); affine: (B, 3, 3)
        # TODO(synk): the per-voxel affine branch (6-D affine) is not implemented.
        image_s = image.shape
        B, C = image_s[0], image_s[-1]
        V = int(np.prod(image_s[1:-1]))
        # Keep the image f32 in HBM (PyTorch semantics); the bf16 cast for the
        # MXU happens inside the kernel where it is free.
        img = image.reshape(B, V, C).astype(jnp.float32)

        aff_inv = jnp.linalg.inv(affine.astype(jnp.float32))                   # (B, 3, 3)
        vi = self.psf_vectors.T                                                # (3, N)
        vi_hat = jnp.einsum('bij,jn->bin', aff_inv, vi)                        # (B, 3, N)
        vi_hat_t = jnp.transpose(vi_hat, (0, 2, 1))                            # (B, N, 3)

        # M_prime^T directly: real_sh_basis gives (B, N, C)
        mprT = real_sh_basis(vi_hat_t, self.lmax)                              # (B, N, C)

        if modulate:
            # Note: matches PyTorch (torch.det, no abs()); a reflecting affine
            # flips the sign of the modulation in both implementations.
            mod = (jnp.linalg.norm(vi_hat, axis=-2)
                   / jnp.linalg.det(aff_inv)[:, None])                         # (B, N)
        else:
            mod = jnp.ones((B, vi.shape[1]), jnp.float32)
        mod = mod.astype(jnp.float32)

        # Fused per-batch reorientation matrix (tiny: B x 45 x 45):
        #   K_b[c_in, c_out] = sum_n M_p[n, c_in] * mod_b[n] * M_prime_b[c_out, n]
        mpT = self.M_p.T                                                       # (C, N)
        K = jnp.einsum('cn,bn,bnd->bcd', mpT, mod, mprT).astype(jnp.float32)   # (B, C, C)

        out = reorient_pallas(img, K)                                          # (B, V, C)
        return out.reshape(image_s)


def _reference(image, affine, mod_layer, modulate=True):
    """Pure-JAX reference mirroring the PyTorch forward (unfused two-matmul path)."""
    image_s = image.shape
    B, C = image_s[0], image_s[-1]
    V = int(np.prod(image_s[1:-1]))
    img = image.reshape(B, V, C).transpose(0, 2, 1)                            # (B, C, V)
    aff_inv = jnp.linalg.inv(affine)
    vi = mod_layer.psf_vectors.T                                               # (3, N)
    w = jnp.einsum('nc,bcv->bnv', mod_layer.M_p, img)                          # (B, N, V)
    vi_hat = jnp.einsum('bij,jn->bin', aff_inv, vi)                            # (B, 3, N)
    M_prime = real_sh_basis(jnp.transpose(vi_hat, (0, 2, 1)),
                            mod_layer.lmax).transpose(0, 2, 1)                 # (B, C, N)
    if modulate:
        mod = jnp.linalg.norm(vi_hat, axis=-2) / jnp.linalg.det(aff_inv)[:, None]
        w = mod[:, :, None] * w
    out = jnp.einsum('bcn,bnv->bvc', M_prime, w)                               # (B, V, C)
    return out.reshape(image_s)


if __name__ == "__main__":
    key = jax.random.PRNGKey(0)
    k_img, k_aff = jax.random.split(key)

    B, X, Y, Z = 2, 8, 8, 8
    image = jax.random.normal(k_img, (B, X, Y, Z, N_COEFF), dtype=jnp.float32)
    affine = (jnp.eye(3, dtype=jnp.float32)[None]
              + 0.1 * jax.random.normal(k_aff, (B, 3, 3), dtype=jnp.float32))

    layer = FODFReorientation()
    out = layer(image, affine, modulate=True)
    out = jax.block_until_ready(out)

    ref = jax.block_until_ready(_reference(image, affine, layer, modulate=True))
    # Tolerance accounts for bf16 MXU operands (f32 accumulation) in the kernel.
    np.testing.assert_allclose(np.asarray(out), np.asarray(ref), rtol=2e-2, atol=2e-2)
    assert out.shape == image.shape and out.dtype == jnp.float32

    # Also exercise the B == 1 grid-ordering path (V-leading, >= 2 tiles).
    out1 = jax.block_until_ready(layer(image[:1], affine[:1], modulate=True))
    ref1 = jax.block_until_ready(_reference(image[:1], affine[:1], layer, modulate=True))
    np.testing.assert_allclose(np.asarray(out1), np.asarray(ref1), rtol=2e-2, atol=2e-2)

    print("KERNEL_OK")
</pallas_src>

<mosaic_0001>
module attributes {stable_mosaic.version = 11 : i64} {
  func.func @_reorient_kernel(%arg0: i32, %arg1: i32, %arg2: memref<1x512x45xf32, #tpu.memory_space<vmem>>, %arg3: memref<1x45x45xf32, #tpu.memory_space<vmem>>, %arg4: memref<1x512x45xf32, #tpu.memory_space<vmem>>) attributes {dimension_semantics = [#tpu.dimension_semantics<parallel>, #tpu.dimension_semantics<parallel>], iteration_bounds = array<i64: 2, 1>, scalar_prefetch = 0 : i64, scratch_operands = 0 : i64, tpu.core_type = #tpu.core_type<tc>, window_params = [{transform_indices = @transform_0, window_bounds = array<i64: 1, 512, 45>}, {transform_indices = @transform_1, window_bounds = array<i64: 1, 45, 45>}, {transform_indices = @transform_2, window_bounds = array<i64: 1, 512, 45>}]} {
    %c0 = arith.constant 0 : index
    %c0_0 = arith.constant 0 : index
    %c0_1 = arith.constant 0 : index
    %0 = vector.load %arg2[%c0, %c0_0, %c0_1] : memref<1x512x45xf32, #tpu.memory_space<vmem>>, vector<1x512x45xf32>
    %1 = vector.shape_cast %0 : vector<1x512x45xf32> to vector<512x45xf32>
    %2 = arith.truncf %1 : vector<512x45xf32> to vector<512x45xbf16>
    %c0_2 = arith.constant 0 : index
    %c0_3 = arith.constant 0 : index
    %c0_4 = arith.constant 0 : index
    %3 = vector.load %arg3[%c0_2, %c0_3, %c0_4] : memref<1x45x45xf32, #tpu.memory_space<vmem>>, vector<1x45x45xf32>
    %4 = vector.shape_cast %3 : vector<1x45x45xf32> to vector<45x45xf32>
    %5 = arith.truncf %4 : vector<45x45xf32> to vector<45x45xbf16>
    %cst = arith.constant dense<0.000000e+00> : vector<512x45xf32>
    %6 = tpu.matmul %2, %5, %cst {dimension_numbers = #tpu.dot_dimension_numbers<[1], [0], [0], [1], [0, 0, 1, 1], [], []>} : vector<512x45xbf16>, vector<45x45xbf16>, vector<512x45xf32> -> vector<512x45xf32>
    %c0_5 = arith.constant 0 : index
    %c0_6 = arith.constant 0 : index
    %c0_7 = arith.constant 0 : index
    %7 = vector.load %arg4[%c0_5, %c0_6, %c0_7] : memref<1x512x45xf32, #tpu.memory_space<vmem>>, vector<1x512x45xf32>
    %8 = vector.shape_cast %7 : vector<1x512x45xf32> to vector<512x45xf32>
    %9 = vector.shape_cast %6 : vector<512x45xf32> to vector<1x512x45xf32>
    tpu.vector_store %arg4[%c0_5, %c0_6, %c0_7], %9 {strides = array<i32>} : memref<1x512x45xf32, #tpu.memory_space<vmem>>, vector<1x512x45xf32>,
    return
  }
  func.func @transform_0(%arg0: i32, %arg1: i32) -> (i32, i32, i32) {
    %c0_i32 = arith.constant 0 : i32
    %c0_i32_0 = arith.constant 0 : i32
    return %arg0, %arg1, %c0_i32 : i32, i32, i32
  }
  func.func @transform_1(%arg0: i32, %arg1: i32) -> (i32, i32, i32) {
    %c0_i32 = arith.constant 0 : i32
    %c0_i32_0 = arith.constant 0 : i32
    %c0_i32_1 = arith.constant 0 : i32
    return %arg0, %c0_i32, %c0_i32_0 : i32, i32, i32
  }
  func.func @transform_2(%arg0: i32, %arg1: i32) -> (i32, i32, i32) {
    %c0_i32 = arith.constant 0 : i32
    %c0_i32_0 = arith.constant 0 : i32
    return %arg0, %arg1, %c0_i32 : i32, i32, i32
  }
}

</mosaic_0001>

<llo_original>
// kernel: tpu_custom_call.1
$region0: #{tpu_custom_call.1}
  #allocation0 [shape = 'u32[]', space=smem, size = 0x4, offset = 0x4, fixed_abs, tag = 'smem constant byte address 0x4 - core index']
  #allocation1 [shape = 'u32[144,128]{1,0:T(1,128)}', space=vmem, size = 0x12000, scoped, tag = 'internal scratch']
  %s0 = inlined_call_operand.vmem [shape: f32[2,512,45], index: 0, kind: input, shape index: {}]
  %s1 = inlined_call_operand.vmem [shape: f32[2,45,45], index: 1, kind: input, shape index: {}]
  %s2 = inlined_call_operand.vmem [shape: f32[2,512,45], index: 2, kind: output, shape index: {}]
  %s3 = sld [smem:[#allocation0]]
  $region41: #{tpu_custom_call.1} parent=0
    _
  %s5 = ssub.s32 1, %s3
  %s6 = scalar_select 0, %s5, %s3
  loop: start=0, step=1, limit=4
  $region2: #{tpu_custom_call.1} parent=0 // loop_pre_header
    _
  $region3: #{tpu_custom_call.1} parent=0 // loop_header
    %s8 = sphi 0, %s12
    %p9 = scmp.ge.s32.totalorder %s8, 4
    %s15 = sphi 0, %s27
    %s16 = sphi 0, %s23
    %s17 = sphi 0, %s15
    %s18 = sphi 0, %s16
    %s19 = sphi 0, %s17
    %s20 = sphi 0, %s18
    %s32 = sphi 0, %s34
    %s35 = sphi 0, %s32
    %s36 = sphi 0, %s35
    %s52 = sphi 0, %s36
    %s58 = sphi 0, %s60
    %s61 = sphi 0, %s58
    %s62 = sphi 0, %s61
    %s78 = sphi 0, %s62
    %s86 = sphi 0, %s88
    %s89 = sphi 0, %s86
    %s90 = sphi 0, %s89
    %s106 = sphi 0, %s90
  $region4: #{tpu_custom_call.1} parent=0 // loop_header_branch
    %11 = sbr.rel (%p9) target = $region8
  $region5: #{tpu_custom_call.1} parent=0 // loop_body
    %s13 = ssub.s32 %s8, 1
    %s14 = ssub.s32 %s8, 2
    %s21 = sadd.s32 1, %s16
    %p22 = scmp.ge.s32.totalorder %s21, 1
    %s23 = scalar_select %p22, 0, %s21
    %s24 = sadd.s32 1, %s15
    %s25 = scalar_select %p22, %s24, %s15
    %p26 = scmp.ge.s32.totalorder %s25, 2
    %s27 = scalar_select %p26, 0, %s25
    %s28 = ssub.s32 %s15, %s27
    %s29 = ssub.s32 %s16, %s23
    %s30 = sor.u32 %s28, %s29
    %p31 = scmp.eq.s32.totalorder %s30, 0
    %s33 = sadd.s32 %s32, 1
    %s34 = scalar_select %p31, %s32, %s33
    %p37 = pneg %p31
    %p38 = scmp.eq.s32.totalorder %s8, 1
    %p39 = por %p37, %p38
    %p40 = scmp.ne.s32.totalorder %s32, %s35
    %p41 = scmp.eq.s32.totalorder %s8, 0
    %p42 = por %p40, %p41
    %p43 = scmp.ne.s32.totalorder %s32, %s35
    %p44 = scmp.eq.s32.totalorder %s13, 1
    %p45 = por %p43, %p44
    %p46 = scmp.ne.s32.totalorder %s35, %s36
    %p47 = scmp.eq.s32.totalorder %s13, 0
    %p48 = por %p46, %p47
    %p49 = scmp.ne.s32.totalorder %s35, %s36
    %p50 = scmp.eq.s32.totalorder %s14, 1
    %p51 = por %p49, %p50
    %p53 = scmp.ne.s32.totalorder %s36, %s52
    %p54 = scmp.eq.s32.totalorder %s14, 0
    %p55 = por %p53, %p54
    %s56 = ssub.s32 %s15, %s27
    %p57 = scmp.eq.s32.totalorder %s56, 0
    %s59 = sadd.s32 %s58, 1
    %s60 = scalar_select %p57, %s58, %s59
    %p63 = pneg %p57
    %p64 = scmp.eq.s32.totalorder %s8, 1
    %p65 = por %p63, %p64
    %p66 = scmp.ne.s32.totalorder %s58, %s61
    %p67 = scmp.eq.s32.totalorder %s8, 0
    %p68 = por %p66, %p67
    %p69 = scmp.ne.s32.totalorder %s58, %s61
    %p70 = scmp.eq.s32.totalorder %s13, 1
    %p71 = por %p69, %p70
    %p72 = scmp.ne.s32.totalorder %s61, %s62
    %p73 = scmp.eq.s32.totalorder %s13, 0
    %p74 = por %p72, %p73
    %p75 = scmp.ne.s32.totalorder %s61, %s62
    %p76 = scmp.eq.s32.totalorder %s14, 1
    %p77 = por %p75, %p76
    %p79 = scmp.ne.s32.totalorder %s62, %s78
    %p80 = scmp.eq.s32.totalorder %s14, 0
    %p81 = por %p79, %p80
    %s82 = ssub.s32 %s15, %s27
    %s83 = ssub.s32 %s16, %s23
    %s84 = sor.u32 %s82, %s83
    %p85 = scmp.eq.s32.totalorder %s84, 0
    %s87 = sadd.s32 %s86, 1
    %s88 = scalar_select %p85, %s86, %s87
    %p91 = pneg %p85
    %p92 = scmp.eq.s32.totalorder %s8, 1
    %p93 = por %p91, %p92
    %p94 = scmp.ne.s32.totalorder %s86, %s89
    %p95 = scmp.eq.s32.totalorder %s8, 0
    %p96 = por %p94, %p95
    %p97 = scmp.ne.s32.totalorder %s86, %s89
    %p98 = scmp.eq.s32.totalorder %s13, 1
    %p99 = por %p97, %p98
    %p100 = scmp.ne.s32.totalorder %s89, %s90
    %p101 = scmp.eq.s32.totalorder %s13, 0
    %p102 = por %p100, %p101
    %p103 = scmp.ne.s32.totalorder %s89, %s90
    %p104 = scmp.eq.s32.totalorder %s14, 1
    %p105 = por %p103, %p104
    %p107 = scmp.ne.s32.totalorder %s90, %s106
    %p108 = scmp.eq.s32.totalorder %s14, 0
    %p109 = por %p107, %p108
    %p110 = scmp.le.s32.totalorder 1, %s8
    %p111 = scmp.lt.s32.totalorder %s8, 3
    %p112 = pnand %p110, %p111
    %p113 = pneg %p112
    // Predicated region
    $region9: #{tpu_custom_call.1} parent=5 // pred_check
      _
    $region10: #{tpu_custom_call.1} parent=5 // pred_check_branch
      %115 = sbr.rel (%p112) target = $region12
    $region11: #{tpu_custom_call.1} parent=5 // pred_region
      %s116 = ssub.s32 %s8, 1
    $region12: #{tpu_custom_call.1} parent=5 // pred_fallthru
      _
    %p117 = scmp.lt.s32.totalorder %s8, 2
    // Predicated region
    $region13: #{tpu_custom_call.1} parent=5 // pred_check
      %p118 = pneg %p117
    $region14: #{tpu_custom_call.1} parent=5 // pred_check_branch
      %120 = sbr.rel (%p118) target = $region16
    $region15: #{tpu_custom_call.1} parent=5 // pred_region
      // Predicated region
      $region17: #{tpu_custom_call.1} parent=15 // pred_check
        %p121 = pneg %p42
      $region18: #{tpu_custom_call.1} parent=15 // pred_check_branch
        %123 = sbr.rel (%p121) target = $region20
      $region19: #{tpu_custom_call.1} parent=15 // pred_region
        %s124 = smul.u32 64, %s16
        %p125 = scmp.lt.s32.totalorder %s15, 1
        %s126 = scalar_select %p125, %s15, 1
        %p127 = scmp.lt.s32.totalorder %s124, 63
        %s128 = scalar_select %p127, %s124, 63
        %s129 = smul.addr %s126, 64
        %s130 = sadd.s32 %s128, %s129
        %s131 = smul.addr %s130, 8
        %s132 = scalar_lea.vmem %s0, %s131
        %s133 = smul.u32 64, %s16
      $region20: #{tpu_custom_call.1} parent=15 // pred_fallthru
        _
      // Predicated region
      $region21: #{tpu_custom_call.1} parent=15 // pred_check
        %p134 = pneg %p68
      $region22: #{tpu_custom_call.1} parent=15 // pred_check_branch
        %136 = sbr.rel (%p134) target = $region24
      $region23: #{tpu_custom_call.1} parent=15 // pred_region
        %p137 = scmp.lt.s32.totalorder %s15, 1
        %s138 = scalar_select %p137, %s15, 1
        %s139 = smul.addr %s138, 6
        %s140 = smul.addr %s139, 8
        %s141 = scalar_lea.vmem %s1, %s140
      $region24: #{tpu_custom_call.1} parent=15 // pred_fallthru
        _
    $region16: #{tpu_custom_call.1} parent=5 // pred_fallthru
      _
    %p142 = scmp.le.s32.totalorder 1, %s8
    %p143 = scmp.lt.s32.totalorder %s8, 3
    %p144 = pnand %p142, %p143
    %p145 = pneg %p144
    // Predicated region
    $region25: #{tpu_custom_call.1} parent=5 // pred_check
      _
    $region26: #{tpu_custom_call.1} parent=5 // pred_check_branch
      %147 = sbr.rel (%p144) target = $region28
    $region27: #{tpu_custom_call.1} parent=5 // pred_region
      %s148 = ssub.s32 %s8, 1
      %s149 = smul.u32 64, %s18
      %p150 = scmp.lt.s32.totalorder %s17, 1
      %s151 = scalar_select %p150, %s17, 1
      %p152 = scmp.lt.s32.totalorder %s149, 63
      %s153 = scalar_select %p152, %s149, 63
      %s154 = smul.addr %s151, 64
      %s155 = sadd.s32 %s153, %s154
      %s156 = smul.addr %s155, 8
      %s157 = scalar_lea.vmem %s0, %s156
      %p158 = pneg %p48
      %p159 = pneg %p45
      %p160 = scmp.lt.s32.totalorder %s17, 1
      %s161 = scalar_select %p160, %s17, 1
      %s162 = smul.addr %s161, 6
      %s163 = smul.addr %s162, 8
      %s164 = scalar_lea.vmem %s1, %s163
      %p165 = pneg %p74
      %p166 = pneg %p71
      %p167 = pneg %p102
      %p168 = pneg %p99
      %s169 = smul.u32 64, %s18
      %p170 = scmp.lt.s32.totalorder %s17, 1
      %s171 = scalar_select %p170, %s17, 1
      %p172 = scmp.lt.s32.totalorder %s169, 63
      %s173 = scalar_select %p172, %s169, 63
      %s174 = smul.addr %s171, 64
      %s175 = sadd.s32 %s173, %s174
      %s176 = smul.addr %s175, 8
      %s177 = scalar_lea.vmem %s2, %s176
      %s178 = smul.u32 64, %s18
      %p179 = scmp.lt.s32.totalorder %s17, 1
      %s180 = scalar_select %p179, %s17, 1
      %p181 = scmp.lt.s32.totalorder %s178, 63
      %s182 = scalar_select %p181, %s178, 63
      %s183 = smul.addr %s180, 64
      %s184 = sadd.s32 %s182, %s183
      %s185 = smul.addr %s184, 8
      %s186 = scalar_lea.vmem %s0, %s185
      %s187 = smul.u32 64, %s18
      %p188 = scmp.lt.s32.totalorder %s17, 1
      %s189 = scalar_select %p188, %s17, 1
      %s190 = smul.addr %s189, 6
      %s191 = smul.addr %s190, 8
      %s192 = scalar_lea.vmem %s1, %s191
      %s193 = smul.u32 64, %s18
      %p194 = scmp.lt.s32.totalorder %s17, 1
      %s195 = scalar_select %p194, %s17, 1
      %p196 = scmp.lt.s32.totalorder %s193, 63
      %s197 = scalar_select %p196, %s193, 63
      %s198 = smul.addr %s195, 64
      %s199 = sadd.s32 %s197, %s198
      %s200 = smul.addr %s199, 8
      %s201 = scalar_lea.vmem %s2, %s200
      %s202 = smul.u32 64, %s18
      %v204 = vld [vmem:[%s186] sm:$0xff]
      %v205 = vld [vmem:[%s186 + $0x8] sm:$0xff]
      %v206 = vld [vmem:[%s186 + $0x10] sm:$0xff]
      %v207 = vld [vmem:[%s186 + $0x18] sm:$0xff]
      %v208 = vld [vmem:[%s186 + $0x20] sm:$0xff]
      %v209 = vld [vmem:[%s186 + $0x28] sm:$0xff]
      %v210 = vld [vmem:[%s186 + $0x30] sm:$0xff]
      %v211 = vld [vmem:[%s186 + $0x38] sm:$0xff]
      %v212 = vld [vmem:[%s186 + $0x40] sm:$0xff]
      %v213 = vld [vmem:[%s186 + $0x48] sm:$0xff]
      %v214 = vld [vmem:[%s186 + $0x50] sm:$0xff]
      %v215 = vld [vmem:[%s186 + $0x58] sm:$0xff]
      %v216 = vld [vmem:[%s186 + $0x60] sm:$0xff]
      %v217 = vld [vmem:[%s186 + $0x68] sm:$0xff]
      %v218 = vld [vmem:[%s186 + $0x70] sm:$0xff]
      %v219 = vld [vmem:[%s186 + $0x78] sm:$0xff]
      %v220 = vld [vmem:[%s186 + $0x80] sm:$0xff]
      %v221 = vld [vmem:[%s186 + $0x88] sm:$0xff]
      %v222 = vld [vmem:[%s186 + $0x90] sm:$0xff]
      %v223 = vld [vmem:[%s186 + $0x98] sm:$0xff]
      %v224 = vld [vmem:[%s186 + $0xa0] sm:$0xff]
      %v225 = vld [vmem:[%s186 + $0xa8] sm:$0xff]
      %v226 = vld [vmem:[%s186 + $0xb0] sm:$0xff]
      %v227 = vld [vmem:[%s186 + $0xb8] sm:$0xff]
      %v228 = vld [vmem:[%s186 + $0xc0] sm:$0xff]
      %v229 = vld [vmem:[%s186 + $0xc8] sm:$0xff]
      %v230 = vld [vmem:[%s186 + $0xd0] sm:$0xff]
      %v231 = vld [vmem:[%s186 + $0xd8] sm:$0xff]
      %v232 = vld [vmem:[%s186 + $0xe0] sm:$0xff]
      %v233 = vld [vmem:[%s186 + $0xe8] sm:$0xff]
      %v234 = vld [vmem:[%s186 + $0xf0] sm:$0xff]
      %v235 = vld [vmem:[%s186 + $0xf8] sm:$0xff]
      %v236 = vld [vmem:[%s186 + $0x100] sm:$0xff]
      %v237 = vld [vmem:[%s186 + $0x108] sm:$0xff]
      %v238 = vld [vmem:[%s186 + $0x110] sm:$0xff]
      %v239 = vld [vmem:[%s186 + $0x118] sm:$0xff]
      %v240 = vld [vmem:[%s186 + $0x120] sm:$0xff]
      %v241 = vld [vmem:[%s186 + $0x128] sm:$0xff]
      %v242 = vld [vmem:[%s186 + $0x130] sm:$0xff]
      %v243 = vld [vmem:[%s186 + $0x138] sm:$0xff]
      %v244 = vld [vmem:[%s186 + $0x140] sm:$0xff]
      %v245 = vld [vmem:[%s186 + $0x148] sm:$0xff]
      %v246 = vld [vmem:[%s186 + $0x150] sm:$0xff]
      %v247 = vld [vmem:[%s186 + $0x158] sm:$0xff]
      %v248 = vld [vmem:[%s186 + $0x160] sm:$0xff]
      %v249 = vld [vmem:[%s186 + $0x168] sm:$0xff]
      %v250 = vld [vmem:[%s186 + $0x170] sm:$0xff]
      %v251 = vld [vmem:[%s186 + $0x178] sm:$0xff]
      %v252 = vld [vmem:[%s186 + $0x180] sm:$0xff]
      %v253 = vld [vmem:[%s186 + $0x188] sm:$0xff]
      %v254 = vld [vmem:[%s186 + $0x190] sm:$0xff]
      %v255 = vld [vmem:[%s186 + $0x198] sm:$0xff]
      %v256 = vld [vmem:[%s186 + $0x1a0] sm:$0xff]
      %v257 = vld [vmem:[%s186 + $0x1a8] sm:$0xff]
      %v258 = vld [vmem:[%s186 + $0x1b0] sm:$0xff]
      %v259 = vld [vmem:[%s186 + $0x1b8] sm:$0xff]
      %v260 = vld [vmem:[%s186 + $0x1c0] sm:$0xff]
      %v261 = vld [vmem:[%s186 + $0x1c8] sm:$0xff]
      %v262 = vld [vmem:[%s186 + $0x1d0] sm:$0xff]
      %v263 = vld [vmem:[%s186 + $0x1d8] sm:$0xff]
      %v264 = vld [vmem:[%s186 + $0x1e0] sm:$0xff]
      %v265 = vld [vmem:[%s186 + $0x1e8] sm:$0xff]
      %v266 = vld [vmem:[%s186 + $0x1f0] sm:$0xff]
      %v267 = vld [vmem:[%s186 + $0x1f8] sm:$0xff]
      %v268 = vpack.c.bf16 %v205, %v204
      %v269 = vpack.c.bf16 %v207, %v206
      %v270 = vpack.c.bf16 %v209, %v208
      %v271 = vpack.c.bf16 %v211, %v210
      %v272 = vpack.c.bf16 %v213, %v212
      %v273 = vpack.c.bf16 %v215, %v214
      %v274 = vpack.c.bf16 %v217, %v216
      %v275 = vpack.c.bf16 %v219, %v218
      %v276 = vpack.c.bf16 %v221, %v220
      %v277 = vpack.c.bf16 %v223, %v222
      %v278 = vpack.c.bf16 %v225, %v224
      %v279 = vpack.c.bf16 %v227, %v226
      %v280 = vpack.c.bf16 %v229, %v228
      %v281 = vpack.c.bf16 %v231, %v230
      %v282 = vpack.c.bf16 %v233, %v232
      %v283 = vpack.c.bf16 %v235, %v234
      %v284 = vpack.c.bf16 %v237, %v236
      %v285 = vpack.c.bf16 %v239, %v238
      %v286 = vpack.c.bf16 %v241, %v240
      %v287 = vpack.c.bf16 %v243, %v242
      %v288 = vpack.c.bf16 %v245, %v244
      %v289 = vpack.c.bf16 %v247, %v246
      %v290 = vpack.c.bf16 %v249, %v248
      %v291 = vpack.c.bf16 %v251, %v250
      %v292 = vpack.c.bf16 %v253, %v252
      %v293 = vpack.c.bf16 %v255, %v254
      %v294 = vpack.c.bf16 %v257, %v256
      %v295 = vpack.c.bf16 %v259, %v258
      %v296 = vpack.c.bf16 %v261, %v260
      %v297 = vpack.c.bf16 %v263, %v262
      %v298 = vpack.c.bf16 %v265, %v264
      %v299 = vpack.c.bf16 %v267, %v266
      %v300 = vld [vmem:[%s192] sm:$0xff]
      %v301 = vld [vmem:[%s192 + $0x8] sm:$0xff]
      %v302 = vld [vmem:[%s192 + $0x10] sm:$0xff]
      %v303 = vld [vmem:[%s192 + $0x18] sm:$0xff]
      %v304 = vld [vmem:[%s192 + $0x20] sm:$0xff]
      %v305 = vld [vmem:[%s192 + $0x28] sm:$0x1f]
      %v306 = vpack.c.bf16 %v301, %v300
      %v307 = vpack.c.bf16 %v303, %v302
      %v308 = vpack.c.bf16 %v305, %v304
      %vm309 = vcmask 367616
      %v311 = vsel %vm309, %v268, 0
      %v314 = vsel %vm309, %v269, 0
      %v317 = vsel %vm309, %v270, 0
      %v320 = vsel %vm309, %v271, 0
      %v323 = vsel %vm309, %v272, 0
      %v326 = vsel %vm309, %v273, 0
      %v329 = vsel %vm309, %v274, 0
      %v332 = vsel %vm309, %v275, 0
      %v335 = vsel %vm309, %v276, 0
      %v338 = vsel %vm309, %v277, 0
      %v341 = vsel %vm309, %v278, 0
      %v344 = vsel %vm309, %v279, 0
      %v347 = vsel %vm309, %v280, 0
      %v350 = vsel %vm309, %v281, 0
      %v353 = vsel %vm309, %v282, 0
      %v356 = vsel %vm309, %v283, 0
      %v359 = vsel %vm309, %v284, 0
      %v362 = vsel %vm309, %v285, 0
      %v365 = vsel %vm309, %v286, 0
      %v368 = vsel %vm309, %v287, 0
      %v371 = vsel %vm309, %v288, 0
      %v374 = vsel %vm309, %v289, 0
      %v377 = vsel %vm309, %v290, 0
      %v380 = vsel %vm309, %v291, 0
      %v383 = vsel %vm309, %v292, 0
      %v386 = vsel %vm309, %v293, 0
      %v389 = vsel %vm309, %v294, 0
      %v392 = vsel %vm309, %v295, 0
      %v395 = vsel %vm309, %v296, 0
      %v398 = vsel %vm309, %v297, 0
      %v401 = vsel %vm309, %v298, 0
      %v404 = vsel %vm309, %v299, 0
      %vm406 = vcmask 1045504
      %vm407 = vcmask 1046528
      %v408 = vsel %vm406, 4294967295, 65535
      %v409 = vsel %vm407, %v408, 0
      %v411 = vand.u32 %v308, %v409
      %413 = vmatprep.subr.bf16.mxu0 0
      %414 = vmatpush1.bf16.msra.mxu0 0
      %415 = vmatprep.subr.bf16.mxu0 0
      %416 = vmatpush1.bf16.msra.mxu0 0
      %417 = vmatprep.subr.bf16.mxu0 0
      %418 = vmatpush1.bf16.msra.mxu0 0
      %419 = vmatprep.subr.bf16.mxu0 0
      %420 = vmatpush1.bf16.msra.mxu0 0
      %421 = vmatprep.subr.bf16.mxu0 0
      %422 = vmatpush1.bf16.msra.mxu0 0
      %423 = vmatprep.subr.bf16.mxu0 0
      %424 = vmatpush1.bf16.msra.mxu0 %v411
      %425 = vmatprep.subr.bf16.mxu0 0
      %426 = vmatpush1.bf16.msra.mxu0 %v307
      %427 = vmatprep.subr.bf16.mxu0 0
      %428 = vmatpush1.bf16.msra.mxu0 %v306
      %429 = vmatprep.subr.bf16.mxu0 0
      %430 = vmatpush2.bf16.msra.mxu0 0
      %431 = vmatprep.subr.bf16.mxu0 0
      %432 = vmatpush2.bf16.msra.mxu0 0
      %433 = vmatprep.subr.bf16.mxu0 0
      %434 = vmatpush2.bf16.msra.mxu0 0
      %435 = vmatprep.subr.bf16.mxu0 0
      %436 = vmatpush2.bf16.msra.mxu0 0
      %437 = vmatprep.subr.bf16.mxu0 0
      %438 = vmatpush2.bf16.msra.mxu0 0
      %439 = vmatprep.subr.bf16.mxu0 0
      %440 = vmatpush2.bf16.msra.mxu0 0
      %441 = vmatprep.subr.bf16.mxu0 0
      %442 = vmatpush2.bf16.msra.mxu0 0
      %443 = vmatprep.subr.bf16.mxu0 0
      %444 = vmatpush2.bf16.msra.mxu0 0
      %445 = vmatprep.mubr.bf16.mxu0 0
      %446 = vmatmul.mubr.bf16.gmra.mxu0 %v311
      %v447 = vpop.f32.mrf.mxu0
      %v448 = vadd.f32 0.0, %v447
      %v449 = vpop.f32.mrf.mxu0
      %v450 = vpop.f32.mrf.mxu0
      %v451 = vadd.f32 0.0, %v450
      %v452 = vpop.f32.mrf.mxu0
      %453 = vmatprep.mubr.bf16.mxu0 0
      %454 = vmatmul.mubr.bf16.gmra.mxu0 %v314
      %v455 = vpop.f32.mrf.mxu0
      %v456 = vadd.f32 0.0, %v455
      %v457 = vpop.f32.mrf.mxu0
      %v458 = vpop.f32.mrf.mxu0
      %v459 = vadd.f32 0.0, %v458
      %v460 = vpop.f32.mrf.mxu0
      %461 = vmatprep.mubr.bf16.mxu0 0
      %462 = vmatmul.mubr.bf16.gmra.mxu0 %v317
      %v463 = vpop.f32.mrf.mxu0
      %v464 = vadd.f32 0.0, %v463
      %v465 = vpop.f32.mrf.mxu0
      %v466 = vpop.f32.mrf.mxu0
      %v467 = vadd.f32 0.0, %v466
      %v468 = vpop.f32.mrf.mxu0
      %469 = vmatprep.mubr.bf16.mxu0 0
      %470 = vmatmul.mubr.bf16.gmra.mxu0 %v320
      %v471 = vpop.f32.mrf.mxu0
      %v472 = vadd.f32 0.0, %v471
      %v473 = vpop.f32.mrf.mxu0
      %v474 = vpop.f32.mrf.mxu0
      %v475 = vadd.f32 0.0, %v474
      %v476 = vpop.f32.mrf.mxu0
      %477 = vmatprep.mubr.bf16.mxu0 0
      %478 = vmatmul.mubr.bf16.gmra.mxu0 %v323
      %v479 = vpop.f32.mrf.mxu0
      %v480 = vadd.f32 0.0, %v479
      %v481 = vpop.f32.mrf.mxu0
      %v482 = vpop.f32.mrf.mxu0
      %v483 = vadd.f32 0.0, %v482
      %v484 = vpop.f32.mrf.mxu0
      %485 = vmatprep.mubr.bf16.mxu0 0
      %486 = vmatmul.mubr.bf16.gmra.mxu0 %v326
      %v487 = vpop.f32.mrf.mxu0
      %v488 = vadd.f32 0.0, %v487
      %v489 = vpop.f32.mrf.mxu0
      %v490 = vpop.f32.mrf.mxu0
      %v491 = vadd.f32 0.0, %v490
      %v492 = vpop.f32.mrf.mxu0
      %493 = vmatprep.mubr.bf16.mxu0 0
      %494 = vmatmul.mubr.bf16.gmra.mxu0 %v329
      %v495 = vpop.f32.mrf.mxu0
      %v496 = vadd.f32 0.0, %v495
      %v497 = vpop.f32.mrf.mxu0
      %v498 = vpop.f32.mrf.mxu0
      %v499 = vadd.f32 0.0, %v498
      %v500 = vpop.f32.mrf.mxu0
      %501 = vmatprep.mubr.bf16.mxu0 0
      %502 = vmatmul.mubr.bf16.gmra.mxu0 %v332
      %v503 = vpop.f32.mrf.mxu0
      %v504 = vadd.f32 0.0, %v503
      %v505 = vpop.f32.mrf.mxu0
      %v506 = vpop.f32.mrf.mxu0
      %v507 = vadd.f32 0.0, %v506
      %v508 = vpop.f32.mrf.mxu0
      %509 = vmatprep.mubr.bf16.mxu0 0
      %510 = vmatmul.mubr.bf16.gmra.mxu0 %v335
      %v511 = vpop.f32.mrf.mxu0
      %v512 = vadd.f32 0.0, %v511
      %v513 = vpop.f32.mrf.mxu0
      %v514 = vpop.f32.mrf.mxu0
      %v515 = vadd.f32 0.0, %v514
      %v516 = vpop.f32.mrf.mxu0
      %517 = vmatprep.mubr.bf16.mxu0 0
      %518 = vmatmul.mubr.bf16.gmra.mxu0 %v338
      %v519 = vpop.f32.mrf.mxu0
      %v520 = vadd.f32 0.0, %v519
      %v521 = vpop.f32.mrf.mxu0
      %v522 = vpop.f32.mrf.mxu0
      %v523 = vadd.f32 0.0, %v522
      %v524 = vpop.f32.mrf.mxu0
      %525 = vmatprep.mubr.bf16.mxu0 0
      %526 = vmatmul.mubr.bf16.gmra.mxu0 %v341
      %v527 = vpop.f32.mrf.mxu0
      %v528 = vadd.f32 0.0, %v527
      %v529 = vpop.f32.mrf.mxu0
      %v530 = vpop.f32.mrf.mxu0
      %v531 = vadd.f32 0.0, %v530
      %v532 = vpop.f32.mrf.mxu0
      %533 = vmatprep.mubr.bf16.mxu0 0
      %534 = vmatmul.mubr.bf16.gmra.mxu0 %v344
      %v535 = vpop.f32.mrf.mxu0
      %v536 = vadd.f32 0.0, %v535
      %v537 = vpop.f32.mrf.mxu0
      %v538 = vpop.f32.mrf.mxu0
      %v539 = vadd.f32 0.0, %v538
      %v540 = vpop.f32.mrf.mxu0
      %541 = vmatprep.mubr.bf16.mxu0 0
      %542 = vmatmul.mubr.bf16.gmra.mxu0 %v347
      %v543 = vpop.f32.mrf.mxu0
      %v544 = vadd.f32 0.0, %v543
      %v545 = vpop.f32.mrf.mxu0
      %v546 = vpop.f32.mrf.mxu0
      %v547 = vadd.f32 0.0, %v546
      %v548 = vpop.f32.mrf.mxu0
      %549 = vmatprep.mubr.bf16.mxu0 0
      %550 = vmatmul.mubr.bf16.gmra.mxu0 %v350
      %v551 = vpop.f32.mrf.mxu0
      %v552 = vadd.f32 0.0, %v551
      %v553 = vpop.f32.mrf.mxu0
      %v554 = vpop.f32.mrf.mxu0
      %v555 = vadd.f32 0.0, %v554
      %v556 = vpop.f32.mrf.mxu0
      %557 = vmatprep.mubr.bf16.mxu0 0
      %558 = vmatmul.mubr.bf16.gmra.mxu0 %v353
      %v559 = vpop.f32.mrf.mxu0
      %v560 = vadd.f32 0.0, %v559
      %v561 = vpop.f32.mrf.mxu0
      %v562 = vpop.f32.mrf.mxu0
      %v563 = vadd.f32 0.0, %v562
      %v564 = vpop.f32.mrf.mxu0
      %565 = vmatprep.mubr.bf16.mxu0 0
      %566 = vmatmul.mubr.bf16.gmra.mxu0 %v356
      %v567 = vpop.f32.mrf.mxu0
      %v568 = vadd.f32 0.0, %v567
      %v569 = vpop.f32.mrf.mxu0
      %v570 = vpop.f32.mrf.mxu0
      %v571 = vadd.f32 0.0, %v570
      %v572 = vpop.f32.mrf.mxu0
      %573 = vmatprep.mubr.bf16.mxu0 0
      %574 = vmatmul.mubr.bf16.gmra.mxu0 %v359
      %v575 = vpop.f32.mrf.mxu0
      %v576 = vadd.f32 0.0, %v575
      %v577 = vpop.f32.mrf.mxu0
      %v578 = vpop.f32.mrf.mxu0
      %v579 = vadd.f32 0.0, %v578
      %v580 = vpop.f32.mrf.mxu0
      %581 = vmatprep.mubr.bf16.mxu0 0
      %582 = vmatmul.mubr.bf16.gmra.mxu0 %v362
      %v583 = vpop.f32.mrf.mxu0
      %v584 = vadd.f32 0.0, %v583
      %v585 = vpop.f32.mrf.mxu0
      %v586 = vpop.f32.mrf.mxu0
      %v587 = vadd.f32 0.0, %v586
      %v588 = vpop.f32.mrf.mxu0
      %589 = vmatprep.mubr.bf16.mxu0 0
      %590 = vmatmul.mubr.bf16.gmra.mxu0 %v365
      %v591 = vpop.f32.mrf.mxu0
      %v592 = vadd.f32 0.0, %v591
      %v593 = vpop.f32.mrf.mxu0
      %v594 = vpop.f32.mrf.mxu0
      %v595 = vadd.f32 0.0, %v594
      %v596 = vpop.f32.mrf.mxu0
      %597 = vmatprep.mubr.bf16.mxu0 0
      %598 = vmatmul.mubr.bf16.gmra.mxu0 %v368
      %v599 = vpop.f32.mrf.mxu0
      %v600 = vadd.f32 0.0, %v599
      %v601 = vpop.f32.mrf.mxu0
      %v602 = vpop.f32.mrf.mxu0
      %v603 = vadd.f32 0.0, %v602
      %v604 = vpop.f32.mrf.mxu0
      %605 = vmatprep.mubr.bf16.mxu0 0
      %606 = vmatmul.mubr.bf16.gmra.mxu0 %v371
      %v607 = vpop.f32.mrf.mxu0
      %v608 = vadd.f32 0.0, %v607
      %v609 = vpop.f32.mrf.mxu0
      %v610 = vpop.f32.mrf.mxu0
      %v611 = vadd.f32 0.0, %v610
      %v612 = vpop.f32.mrf.mxu0
      %613 = vmatprep.mubr.bf16.mxu0 0
      %614 = vmatmul.mubr.bf16.gmra.mxu0 %v374
      %v615 = vpop.f32.mrf.mxu0
      %v616 = vadd.f32 0.0, %v615
      %v617 = vpop.f32.mrf.mxu0
      %v618 = vpop.f32.mrf.mxu0
      %v619 = vadd.f32 0.0, %v618
      %v620 = vpop.f32.mrf.mxu0
      %621 = vmatprep.mubr.bf16.mxu0 0
      %622 = vmatmul.mubr.bf16.gmra.mxu0 %v377
      %v623 = vpop.f32.mrf.mxu0
      %v624 = vadd.f32 0.0, %v623
      %v625 = vpop.f32.mrf.mxu0
      %v626 = vpop.f32.mrf.mxu0
      %v627 = vadd.f32 0.0, %v626
      %v628 = vpop.f32.mrf.mxu0
      %629 = vmatprep.mubr.bf16.mxu0 0
      %630 = vmatmul.mubr.bf16.gmra.mxu0 %v380
      %v631 = vpop.f32.mrf.mxu0
      %v632 = vadd.f32 0.0, %v631
      %v633 = vpop.f32.mrf.mxu0
      %v634 = vpop.f32.mrf.mxu0
      %v635 = vadd.f32 0.0, %v634
      %v636 = vpop.f32.mrf.mxu0
      %637 = vmatprep.mubr.bf16.mxu0 0
      %638 = vmatmul.mubr.bf16.gmra.mxu0 %v383
      %v639 = vpop.f32.mrf.mxu0
      %v640 = vadd.f32 0.0, %v639
      %v641 = vpop.f32.mrf.mxu0
      %v642 = vpop.f32.mrf.mxu0
      %v643 = vadd.f32 0.0, %v642
      %v644 = vpop.f32.mrf.mxu0
      %645 = vmatprep.mubr.bf16.mxu0 0
      %646 = vmatmul.mubr.bf16.gmra.mxu0 %v386
      %v647 = vpop.f32.mrf.mxu0
      %v648 = vadd.f32 0.0, %v647
      %v649 = vpop.f32.mrf.mxu0
      %v650 = vpop.f32.mrf.mxu0
      %v651 = vadd.f32 0.0, %v650
      %v652 = vpop.f32.mrf.mxu0
      %653 = vmatprep.mubr.bf16.mxu0 0
      %654 = vmatmul.mubr.bf16.gmra.mxu0 %v389
      %v655 = vpop.f32.mrf.mxu0
      %v656 = vadd.f32 0.0, %v655
      %v657 = vpop.f32.mrf.mxu0
      %v658 = vpop.f32.mrf.mxu0
      %v659 = vadd.f32 0.0, %v658
      %v660 = vpop.f32.mrf.mxu0
      %661 = vmatprep.mubr.bf16.mxu0 0
      %662 = vmatmul.mubr.bf16.gmra.mxu0 %v392
      %v663 = vpop.f32.mrf.mxu0
      %v664 = vadd.f32 0.0, %v663
      %v665 = vpop.f32.mrf.mxu0
      %v666 = vpop.f32.mrf.mxu0
      %v667 = vadd.f32 0.0, %v666
      %v668 = vpop.f32.mrf.mxu0
      %669 = vmatprep.mubr.bf16.mxu0 0
      %670 = vmatmul.mubr.bf16.gmra.mxu0 %v395
      %v671 = vpop.f32.mrf.mxu0
      %v672 = vadd.f32 0.0, %v671
      %v673 = vpop.f32.mrf.mxu0
      %v674 = vpop.f32.mrf.mxu0
      %v675 = vadd.f32 0.0, %v674
      %v676 = vpop.f32.mrf.mxu0
      %677 = vmatprep.mubr.bf16.mxu0 0
      %678 = vmatmul.mubr.bf16.gmra.mxu0 %v398
      %v679 = vpop.f32.mrf.mxu0
      %v680 = vadd.f32 0.0, %v679
      %v681 = vpop.f32.mrf.mxu0
      %v682 = vpop.f32.mrf.mxu0
      %v683 = vadd.f32 0.0, %v682
      %v684 = vpop.f32.mrf.mxu0
      %685 = vmatprep.mubr.bf16.mxu0 0
      %686 = vmatmul.mubr.bf16.gmra.mxu0 %v401
      %v687 = vpop.f32.mrf.mxu0
      %v688 = vadd.f32 0.0, %v687
      %v689 = vpop.f32.mrf.mxu0
      %v690 = vpop.f32.mrf.mxu0
      %v691 = vadd.f32 0.0, %v690
      %v692 = vpop.f32.mrf.mxu0
      %693 = vmatprep.mubr.bf16.mxu0 0
      %694 = vmatmul.mubr.bf16.gmra.mxu0 %v404
      %v695 = vpop.f32.mrf.mxu0
      %v696 = vadd.f32 0.0, %v695
      %v697 = vpop.f32.mrf.mxu0
      %v698 = vpop.f32.mrf.mxu0
      %v699 = vadd.f32 0.0, %v698
      %v700 = vpop.f32.mrf.mxu0
      %701 = vdwg.mxu0
      %702 = vst.msk [vmem:[%s201] sm:$0xff] %vm309, %v448
      %703 = vst.msk [vmem:[%s201 + $0x8] sm:$0xff] %vm309, %v451
      %704 = vst.msk [vmem:[%s201 + $0x10] sm:$0xff] %vm309, %v456
      %705 = vst.msk [vmem:[%s201 + $0x18] sm:$0xff] %vm309, %v459
      %706 = vst.msk [vmem:[%s201 + $0x20] sm:$0xff] %vm309, %v464
      %707 = vst.msk [vmem:[%s201 + $0x28] sm:$0xff] %vm309, %v467
      %708 = vst.msk [vmem:[%s201 + $0x30] sm:$0xff] %vm309, %v472
      %709 = vst.msk [vmem:[%s201 + $0x38] sm:$0xff] %vm309, %v475
      %710 = vst.msk [vmem:[%s201 + $0x40] sm:$0xff] %vm309, %v480
      %711 = vst.msk [vmem:[%s201 + $0x48] sm:$0xff] %vm309, %v483
      %712 = vst.msk [vmem:[%s201 + $0x50] sm:$0xff] %vm309, %v488
      %713 = vst.msk [vmem:[%s201 + $0x58] sm:$0xff] %vm309, %v491
      %714 = vst.msk [vmem:[%s201 + $0x60] sm:$0xff] %vm309, %v496
      %715 = vst.msk [vmem:[%s201 + $0x68] sm:$0xff] %vm309, %v499
      %716 = vst.msk [vmem:[%s201 + $0x70] sm:$0xff] %vm309, %v504
      %717 = vst.msk [vmem:[%s201 + $0x78] sm:$0xff] %vm309, %v507
      %718 = vst.msk [vmem:[%s201 + $0x80] sm:$0xff] %vm309, %v512
      %719 = vst.msk [vmem:[%s201 + $0x88] sm:$0xff] %vm309, %v515
      %720 = vst.msk [vmem:[%s201 + $0x90] sm:$0xff] %vm309, %v520
      %721 = vst.msk [vmem:[%s201 + $0x98] sm:$0xff] %vm309, %v523
      %722 = vst.msk [vmem:[%s201 + $0xa0] sm:$0xff] %vm309, %v528
      %723 = vst.msk [vmem:[%s201 + $0xa8] sm:$0xff] %vm309, %v531
      %724 = vst.msk [vmem:[%s201 + $0xb0] sm:$0xff] %vm309, %v536
      %725 = vst.msk [vmem:[%s201 + $0xb8] sm:$0xff] %vm309, %v539
      %726 = vst.msk [vmem:[%s201 + $0xc0] sm:$0xff] %vm309, %v544
      %727 = vst.msk [vmem:[%s201 + $0xc8] sm:$0xff] %vm309, %v547
      %728 = vst.msk [vmem:[%s201 + $0xd0] sm:$0xff] %vm309, %v552
      %729 = vst.msk [vmem:[%s201 + $0xd8] sm:$0xff] %vm309, %v555
      %730 = vst.msk [vmem:[%s201 + $0xe0] sm:$0xff] %vm309, %v560
      %731 = vst.msk [vmem:[%s201 + $0xe8] sm:$0xff] %vm309, %v563
      %732 = vst.msk [vmem:[%s201 + $0xf0] sm:$0xff] %vm309, %v568
      %733 = vst.msk [vmem:[%s201 + $0xf8] sm:$0xff] %vm309, %v571
      %734 = vst.msk [vmem:[%s201 + $0x100] sm:$0xff] %vm309, %v576
      %735 = vst.msk [vmem:[%s201 + $0x108] sm:$0xff] %vm309, %v579
      %736 = vst.msk [vmem:[%s201 + $0x110] sm:$0xff] %vm309, %v584
      %737 = vst.msk [vmem:[%s201 + $0x118] sm:$0xff] %vm309, %v587
      %738 = vst.msk [vmem:[%s201 + $0x120] sm:$0xff] %vm309, %v592
      %739 = vst.msk [vmem:[%s201 + $0x128] sm:$0xff] %vm309, %v595
      %740 = vst.msk [vmem:[%s201 + $0x130] sm:$0xff] %vm309, %v600
      %741 = vst.msk [vmem:[%s201 + $0x138] sm:$0xff] %vm309, %v603
      %742 = vst.msk [vmem:[%s201 + $0x140] sm:$0xff] %vm309, %v608
      %743 = vst.msk [vmem:[%s201 + $0x148] sm:$0xff] %vm309, %v611
      %744 = vst.msk [vmem:[%s201 + $0x150] sm:$0xff] %vm309, %v616
      %745 = vst.msk [vmem:[%s201 + $0x158] sm:$0xff] %vm309, %v619
      %746 = vst.msk [vmem:[%s201 + $0x160] sm:$0xff] %vm309, %v624
      %747 = vst.msk [vmem:[%s201 + $0x168] sm:$0xff] %vm309, %v627
      %748 = vst.msk [vmem:[%s201 + $0x170] sm:$0xff] %vm309, %v632
      %749 = vst.msk [vmem:[%s201 + $0x178] sm:$0xff] %vm309, %v635
      %750 = vst.msk [vmem:[%s201 + $0x180] sm:$0xff] %vm309, %v640
      %751 = vst.msk [vmem:[%s201 + $0x188] sm:$0xff] %vm309, %v643
      %752 = vst.msk [vmem:[%s201 + $0x190] sm:$0xff] %vm309, %v648
      %753 = vst.msk [vmem:[%s201 + $0x198] sm:$0xff] %vm309, %v651
      %754 = vst.msk [vmem:[%s201 + $0x1a0] sm:$0xff] %vm309, %v656
      %755 = vst.msk [vmem:[%s201 + $0x1a8] sm:$0xff] %vm309, %v659
      %756 = vst.msk [vmem:[%s201 + $0x1b0] sm:$0xff] %vm309, %v664
      %757 = vst.msk [vmem:[%s201 + $0x1b8] sm:$0xff] %vm309, %v667
      %758 = vst.msk [vmem:[%s201 + $0x1c0] sm:$0xff] %vm309, %v672
      %759 = vst.msk [vmem:[%s201 + $0x1c8] sm:$0xff] %vm309, %v675
      %760 = vst.msk [vmem:[%s201 + $0x1d0] sm:$0xff] %vm309, %v680
      %761 = vst.msk [vmem:[%s201 + $0x1d8] sm:$0xff] %vm309, %v683
      %762 = vst.msk [vmem:[%s201 + $0x1e0] sm:$0xff] %vm309, %v688
      %763 = vst.msk [vmem:[%s201 + $0x1e8] sm:$0xff] %vm309, %v691
      %764 = vst.msk [vmem:[%s201 + $0x1f0] sm:$0xff] %vm309, %v696
      %765 = vst.msk [vmem:[%s201 + $0x1f8] sm:$0xff] %vm309, %v699
      %s766 = smul.u32 64, %s18
      %p767 = scmp.lt.s32.totalorder %s17, 1
      %s768 = scalar_select %p767, %s17, 1
      %p769 = scmp.lt.s32.totalorder %s766, 63
      %s770 = scalar_select %p769, %s766, 63
      %s771 = smul.addr %s768, 64
      %s772 = sadd.s32 %s770, %s771
      %s773 = smul.addr %s772, 8
      %s774 = scalar_lea.vmem %s2, %s773
      // Predicated region
      $region29: #{tpu_custom_call.1} parent=27 // pred_check
        %p775 = pneg %p99
      $region30: #{tpu_custom_call.1} parent=27 // pred_check_branch
        %777 = sbr.rel (%p775) target = $region32
      $region31: #{tpu_custom_call.1} parent=27 // pred_region
        %s778 = smul.u32 64, %s18
      $region32: #{tpu_custom_call.1} parent=27 // pred_fallthru
        _
    $region28: #{tpu_custom_call.1} parent=5 // pred_fallthru
      _
    %p779 = scmp.le.s32.totalorder 2, %s8
    // Predicated region
    $region33: #{tpu_custom_call.1} parent=5 // pred_check
      %p780 = pneg %p779
    $region34: #{tpu_custom_call.1} parent=5 // pred_check_branch
      %782 = sbr.rel (%p780) target = $region36
    $region35: #{tpu_custom_call.1} parent=5 // pred_region
      %s783 = ssub.s32 %s8, 2
      // Predicated region
      $region37: #{tpu_custom_call.1} parent=35 // pred_check
        %p784 = pneg %p105
      $region38: #{tpu_custom_call.1} parent=35 // pred_check_branch
        %786 = sbr.rel (%p784) target = $region40
      $region39: #{tpu_custom_call.1} parent=35 // pred_region
        %s787 = smul.u32 64, %s20
        %p788 = scmp.lt.s32.totalorder %s19, 1
        %s789 = scalar_select %p788, %s19, 1
        %p790 = scmp.lt.s32.totalorder %s787, 63
        %s791 = scalar_select %p790, %s787, 63
        %s792 = smul.addr %s789, 64
        %s793 = sadd.s32 %s791, %s792
        %s794 = smul.addr %s793, 8
        %s795 = scalar_lea.vmem %s2, %s794
      $region40: #{tpu_custom_call.1} parent=35 // pred_fallthru
        _
    $region36: #{tpu_custom_call.1} parent=5 // pred_fallthru
      _
  $region6: #{tpu_custom_call.1} parent=0 // loop_footer
    %s12 = sadd.s32 1, %s8
  $region7: #{tpu_custom_call.1} parent=0 // loop_footer_branch
    %7 = sbr.rel target = $region3
  $region8: #{tpu_custom_call.1} parent=0 // loop_exit
    _

</llo_original>
